<compile_context>
chip_gen: v7x
topology: tpu7x:2x2x1
jax: 0.10.0
libtpu: 0.0.40
codegen_flags: <defaults>
</compile_context>

<pallas_src>
import functools

import jax
import jax.numpy as jnp
from jax.experimental import pallas as pl
from jax.experimental.pallas import tpu as pltpu


# M*K*N below this -> plain jnp.dot (pallas_call launch + DMA setup dominate).
# TODO(synk): sweep this crossover (1-8M) per chip generation.
_SMALL_PROBLEM_ELEMS = 1 << 22


def _round_up(x, m):
    return (x + m - 1) // m * m


@functools.lru_cache(maxsize=None)
def _vmem_budget_and_limit():
    """Per-chip VMEM sizing: (tile budget for the double-buffered estimate,
    scoped vmem_limit_bytes)."""
    cap = 64 * 1024 * 1024          # conservative default (v7x per-core VMEM)
    try:
        cap = int(getattr(pltpu.get_tpu_info(), "vmem_capacity_bytes", cap))
    except Exception:
        pass
    budget = max(16 << 20, cap // 2 - (8 << 20))   # conservative double-buffer cap
    limit = max(32 << 20, (cap // 4) * 3)          # scoped VMEM limit
    return budget, limit


def _proj_kernel(x_ref, w_ref, o_ref):
    # Single-K-block matmul: one MXU dot per tile, f32 accumulation, result
    # written straight to the (lane-dense) output tile.  No accumulator
    # scratch, no init/finalize branches.
    o_ref[...] = jnp.dot(
        x_ref[...], w_ref[...], preferred_element_type=jnp.float32
    ).astype(o_ref.dtype)


def _vmem_estimate(tm, tn, K, in_item, out_item):
    # double-buffered x / w input tiles + double-buffered output tile
    return 2 * (tm * K + K * tn) * in_item + 2 * tm * tn * out_item


def _choose_tiles(M, N, K, in_item, out_item, budget):
    """Pick (tm, tn) fitting the VMEM budget, or None if impossible."""
    sub = 8 * max(1, 4 // in_item)   # min sublane tile: 8 f32 / 16 bf16 / 32 int8

    if M <= 2 * sub:
        tm_cands = [_round_up(M, sub)]
    else:
        # Cap tm so there are always >= 2 M-tiles (keeps both v7x TensorCores
        # busy and pipelining alive) and <= 512 rows per tile.
        cap = min(512, _round_up(pl.cdiv(M, 2), sub))
        tm_cands = [cap] + [t for t in (256, 128, 64, 32, 16, 8) if sub <= t < cap]

    # Prefer a full-latent_dim (lane-dense) output tile; fall back to
    # 128-aligned slices only when VMEM forces it (edge handled by cdiv grid).
    if N <= 2048:
        tn_cands = [N] + [t for t in (1024, 512, 256, 128) if t < N]
    else:
        tn_cands = [2048, 1024, 512, 256, 128]

    for tn in tn_cands:              # keep tn large first: lane-dense stores
        for tm in tm_cands:
            if _vmem_estimate(tm, tn, K, in_item, out_item) <= budget:
                return tm, tn
    return None


@functools.partial(jax.jit, static_argnames=("tm", "tn", "out_dtype"))
def _proj_matmul(x, w, *, tm, tn, out_dtype):
    M, K = x.shape
    K2, N = w.shape
    assert K == K2

    ni = pl.cdiv(M, tm)
    nj = pl.cdiv(N, tn)
    x_item = x.dtype.itemsize
    w_item = w.dtype.itemsize

    if nj == 1:
        # Single (resident) weight block; 1-D grid over M so the >1-trip
        # parallel axis is what megacore shards.
        grid = (ni,)
        in_specs = [pl.BlockSpec((tm, K), lambda i: (i, 0)),
                    pl.BlockSpec((K, tn), lambda i: (0, 0))]
        out_spec = pl.BlockSpec((tm, tn), lambda i: (i, 0))
        semantics = ("parallel",)
    elif ni == 1:
        # Single (resident) activation block; 1-D grid over N.
        grid = (nj,)
        in_specs = [pl.BlockSpec((tm, K), lambda j: (0, 0)),
                    pl.BlockSpec((K, tn), lambda j: (0, j))]
        out_spec = pl.BlockSpec((tm, tn), lambda j: (0, j))
        semantics = ("parallel",)
    elif (ni - 1) * K * N * w_item < (nj - 1) * M * K * x_item:
        # Keep X resident (i outer, j inner): re-streaming W ni times is
        # cheaper than re-streaming X nj times.
        grid = (ni, nj)
        in_specs = [pl.BlockSpec((tm, K), lambda i, j: (i, 0)),
                    pl.BlockSpec((K, tn), lambda i, j: (0, j))]
        out_spec = pl.BlockSpec((tm, tn), lambda i, j: (i, j))
        semantics = ("parallel", "parallel")
    else:
        # Keep W resident (j outer, i inner).
        grid = (nj, ni)
        in_specs = [pl.BlockSpec((tm, K), lambda j, i: (i, 0)),
                    pl.BlockSpec((K, tn), lambda j, i: (0, j))]
        out_spec = pl.BlockSpec((tm, tn), lambda j, i: (i, j))
        semantics = ("parallel", "parallel")

    _, vmem_limit = _vmem_budget_and_limit()
    flops = 2 * M * K * N
    bytes_accessed = (M * K * x_item + K * N * w_item
                      + M * N * jnp.dtype(out_dtype).itemsize)

    return pl.pallas_call(
        _proj_kernel,
        out_shape=jax.ShapeDtypeStruct((M, N), out_dtype),
        grid=grid,
        in_specs=in_specs,
        out_specs=out_spec,
        compiler_params=pltpu.CompilerParams(
            dimension_semantics=semantics,
            vmem_limit_bytes=vmem_limit,
        ),
        cost_estimate=pl.CostEstimate(
            flops=flops, transcendentals=0, bytes_accessed=bytes_accessed
        ),
    )(x, w)


def text_projection(text_embed, projection):
    """text_embed [..., input_dim] @ projection [input_dim, latent_dim]."""
    *lead, K = text_embed.shape
    Kw, N = projection.shape
    assert K == Kw

    compute_dtype = jnp.result_type(text_embed.dtype, projection.dtype)
    x2d = text_embed.reshape(-1, K).astype(compute_dtype)
    w = projection.astype(compute_dtype)
    M = x2d.shape[0]

    in_item = jnp.dtype(compute_dtype).itemsize
    out_item = in_item
    sub = 8 * max(1, 4 // in_item)

    budget, _ = _vmem_budget_and_limit()
    tiles = None
    if M >= sub and M * K * N > _SMALL_PROBLEM_ELEMS:
        tiles = _choose_tiles(M, N, K, in_item, out_item, budget)

    if tiles is None:
        # Tiny / skinny problems and VMEM-infeasible K fall back to XLA's
        # fused dot, where a custom kernel launch loses.
        # TODO(synk): add a K-split accumulator path for very large input_dim.
        out2d = jnp.dot(
            x2d, w, preferred_element_type=jnp.float32
        ).astype(compute_dtype)
        return out2d.reshape(*lead, N)

    tm, tn = tiles
    out2d = _proj_matmul(x2d, w, tm=tm, tn=tn, out_dtype=compute_dtype)
    return out2d.reshape(*lead, N)


class TextProjection:
    """JAX/Pallas port of the PyTorch TextProjection module."""

    def __init__(self, input_dim, latent_dim, key, dtype=jnp.float32):
        # nn.init.normal_(mean=0.0, std=input_dim ** -0.5), deterministic here.
        # dtype=jnp.bfloat16 halves HBM traffic on this memory-bound op
        # (v6e/v7x MXUs are bf16-native); accumulation stays f32 in-kernel.
        self.projection = (
            jax.random.normal(key, (input_dim, latent_dim), dtype=jnp.float32)
            * (input_dim ** -0.5)
        ).astype(dtype)
        self.input_dim = input_dim
        self.latent_dim = latent_dim

    def __call__(self, text_embed):
        assert text_embed.shape[-1] == self.input_dim
        return text_projection(text_embed, self.projection)


if __name__ == "__main__":
    key = jax.random.PRNGKey(0)
    k_param, k_x1, k_x2, k_p2, k_x3 = jax.random.split(key, 5)

    # Medium shape: Pallas path, ragged M (154 rows -> two masked 80-row
    # tiles, no host-side pad/slice), single resident weight block,
    # lane-dense 256-wide output tile, 1-D "parallel" grid over M.
    batch, seq, input_dim, latent_dim = 2, 77, 512, 256
    module = TextProjection(input_dim, latent_dim, k_param)
    text_embed = jax.random.normal(k_x1, (batch, seq, input_dim), dtype=jnp.float32)

    out = jax.block_until_ready(module(text_embed))
    ref = jnp.matmul(
        text_embed, module.projection, precision=jax.lax.Precision.HIGHEST
    )
    assert out.shape == (batch, seq, latent_dim)
    assert jnp.allclose(out, ref, atol=2e-2, rtol=2e-2), float(
        jnp.max(jnp.abs(out - ref))
    )

    # Non-128-multiple latent_dim: full-N (200-wide) output block, two M tiles.
    mod2 = TextProjection(384, 200, k_p2)
    x2 = jax.random.normal(k_x3, (4, 64, 384), dtype=jnp.float32)
    out2 = jax.block_until_ready(mod2(x2))
    ref2 = jnp.matmul(x2, mod2.projection, precision=jax.lax.Precision.HIGHEST)
    assert out2.shape == (4, 64, 200)
    assert jnp.allclose(out2, ref2, atol=2e-2, rtol=2e-2), float(
        jnp.max(jnp.abs(out2 - ref2))
    )

    # Tiny shape: exercises the small-problem XLA fallback.
    small = TextProjection(32, 128, k_param)
    x_small = jax.random.normal(k_x2, (2, 8, 32), dtype=jnp.float32)
    out_small = jax.block_until_ready(small(x_small))
    ref_small = x_small @ small.projection
    assert out_small.shape == (2, 8, 128)
    assert jnp.allclose(out_small, ref_small, atol=1e-4, rtol=1e-4)

    print("KERNEL_OK")
</pallas_src>

<mosaic_0001>
module attributes {stable_mosaic.version = 11 : i64} {
  func.func @_proj_kernel(%arg0: i32, %arg1: memref<80x512xf32, #tpu.memory_space<vmem>>, %arg2: memref<512x256xf32, #tpu.memory_space<vmem>>, %arg3: memref<80x256xf32, #tpu.memory_space<vmem>>) attributes {dimension_semantics = [#tpu.dimension_semantics<parallel>], iteration_bounds = array<i64: 2>, scalar_prefetch = 0 : i64, scratch_operands = 0 : i64, tpu.core_type = #tpu.core_type<tc>, window_params = [{transform_indices = @transform_0, window_bounds = array<i64: 80, 512>}, {pipeline_mode = #tpu.pipeline_mode<synchronous>, transform_indices = @transform_1, window_bounds = array<i64: 512, 256>}, {transform_indices = @transform_2, window_bounds = array<i64: 80, 256>}]} {
    %c0 = arith.constant 0 : index
    %c0_0 = arith.constant 0 : index
    %0 = vector.load %arg1[%c0, %c0_0] : memref<80x512xf32, #tpu.memory_space<vmem>>, vector<80x512xf32>
    %c0_1 = arith.constant 0 : index
    %c0_2 = arith.constant 0 : index
    %1 = vector.load %arg2[%c0_1, %c0_2] : memref<512x256xf32, #tpu.memory_space<vmem>>, vector<512x256xf32>
    %cst = arith.constant dense<0.000000e+00> : vector<80x256xf32>
    %2 = tpu.matmul %0, %1, %cst {dimension_numbers = #tpu.dot_dimension_numbers<[1], [0], [0], [1], [0, 0, 1, 1], [], []>} : vector<80x512xf32>, vector<512x256xf32>, vector<80x256xf32> -> vector<80x256xf32>
    %c0_3 = arith.constant 0 : index
    %c0_4 = arith.constant 0 : index
    %3 = vector.load %arg3[%c0_3, %c0_4] : memref<80x256xf32, #tpu.memory_space<vmem>>, vector<80x256xf32>
    tpu.vector_store %arg3[%c0_3, %c0_4], %2 {strides = array<i32>} : memref<80x256xf32, #tpu.memory_space<vmem>>, vector<80x256xf32>,
    return
  }
  func.func @transform_0(%arg0: i32) -> (i32, i32) {
    %c0_i32 = arith.constant 0 : i32
    %c0_i32_0 = arith.constant 0 : i32
    return %arg0, %c0_i32 : i32, i32
  }
  func.func @transform_1(%arg0: i32) -> (i32, i32) {
    %c0_i32 = arith.constant 0 : i32
    %c0_i32_0 = arith.constant 0 : i32
    %c0_i32_1 = arith.constant 0 : i32
    return %c0_i32, %c0_i32_0 : i32, i32
  }
  func.func @transform_2(%arg0: i32) -> (i32, i32) {
    %c0_i32 = arith.constant 0 : i32
    %c0_i32_0 = arith.constant 0 : i32
    return %arg0, %c0_i32 : i32, i32
  }
}

</mosaic_0001>

<llo_original>
// kernel: _proj_matmul.1
$region0: #{_proj_matmul.1}
  #allocation0 [shape = 'u32[]', space=smem, size = 0x4, offset = 0x4, fixed_abs, tag = 'smem constant byte address 0x4 - core index']
  #allocation1 [shape = 'u32[144,128]{1,0:T(1,128)}', space=vmem, size = 0x12000, scoped, tag = 'internal scratch']
  %s0 = inlined_call_operand.hbm [shape: f32[154,512], index: 0, kind: input, shape index: {}]
  %s1 = inlined_call_operand.hbm [shape: f32[512,256], index: 1, kind: input, shape index: {}]
  %s2 = inlined_call_operand.hbm [shape: f32[154,256], index: 2, kind: output, shape index: {}]
  %s3 = sld [smem:[#allocation0]]
  $region49: #{_proj_matmul.1} parent=0
    _
  %s5 = ssub.s32 1, %s3
  %s6 = scalar_select 0, %s5, %s3
  $region1: #{_proj_matmul.1} parent=0
    #allocation2 [shape = 'u8[327680]{0}', space=vmem, size = 0x50000, scoped, tag = 'input window, operand 0']
    #allocation3 [shape = 's32[2]{0}', space=sflag, size = 0x8, scoped, tag = 'scoped memory for _proj_matmul.1']
    #allocation4 [shape = 's32[2]{0}', space=sflag, size = 0x8, scoped, tag = 'scoped memory for _proj_matmul.1']
    #allocation5 [shape = 'u8[524288]{0}', space=vmem, size = 0x80000, scoped, tag = 'input window, operand 1, single buffered']
    #allocation6 [shape = 's32[1]{0}', space=sflag, size = 0x4, scoped, tag = 'scoped memory for _proj_matmul.1']
    #allocation7 [shape = 'u8[163840]{0}', space=vmem, size = 0x28000, scoped, tag = 'output window, operand 0']
    %7 = vsyncpa [#allocation3], 0
    %s8 = scalar_lea.sflag [#allocation3], 1
    %9 = vsyncpa %s8, 0
    %10 = vsyncpa [#allocation6], 0
    %11 = vsyncpa [#allocation4], 0
    %s12 = scalar_lea.sflag [#allocation4], 1
    %13 = vsyncpa %s12, 0
    loop: start=0, step=1, limit=4
    $region2: #{_proj_matmul.1} parent=1 // loop_pre_header
      _
    $region3: #{_proj_matmul.1} parent=1 // loop_header
      %s15 = sphi 0, %s19
      %p16 = scmp.ge.s32.totalorder %s15, 4
      %s25 = sphi 0, %s27
      %s28 = sphi 0, %s25
      %s29 = sphi 0, %s28
      %s45 = sphi 0, %s29
      %s49 = sphi 0, %s49
      %s51 = sphi 0, %s49
      %s52 = sphi 0, %s51
      %s66 = sphi 0, %s52
      %s72 = sphi 0, %s74
      %s75 = sphi 0, %s72
      %s76 = sphi 0, %s75
      %s92 = sphi 0, %s76
    $region4: #{_proj_matmul.1} parent=1 // loop_header_branch
      %18 = sbr.rel (%p16) target = $region8
    $region5: #{_proj_matmul.1} parent=1 // loop_body
      %s20 = ssub.s32 %s15, 1
      %s21 = ssub.s32 %s15, 2
      %s22 = sadd.s32 %s15, 1
      %s23 = ssub.s32 %s15, %s22
      %p24 = scmp.eq.s32.totalorder %s23, 0
      %s26 = sadd.s32 %s25, 1
      %s27 = scalar_select %p24, %s25, %s26
      %p30 = pneg %p24
      %p31 = scmp.eq.s32.totalorder %s15, 1
      %p32 = por %p30, %p31
      %p33 = scmp.ne.s32.totalorder %s25, %s28
      %p34 = scmp.eq.s32.totalorder %s15, 0
      %p35 = por %p33, %p34
      %p36 = scmp.ne.s32.totalorder %s25, %s28
      %p37 = scmp.eq.s32.totalorder %s20, 1
      %p38 = por %p36, %p37
      %p39 = scmp.ne.s32.totalorder %s28, %s29
      %p40 = scmp.eq.s32.totalorder %s20, 0
      %p41 = por %p39, %p40
      %p42 = scmp.ne.s32.totalorder %s28, %s29
      %p43 = scmp.eq.s32.totalorder %s21, 1
      %p44 = por %p42, %p43
      %p46 = scmp.ne.s32.totalorder %s29, %s45
      %p47 = scmp.eq.s32.totalorder %s21, 0
      %p48 = por %p46, %p47
      %s50 = sadd.s32 %s49, 1
      %p53 = scmp.eq.s32.totalorder %s15, 1
      %p54 = scmp.ne.s32.totalorder %s49, %s51
      %p55 = scmp.eq.s32.totalorder %s15, 0
      %p56 = por %p54, %p55
      %p57 = scmp.ne.s32.totalorder %s49, %s51
      %p58 = scmp.eq.s32.totalorder %s20, 1
      %p59 = por %p57, %p58
      %p60 = scmp.ne.s32.totalorder %s51, %s52
      %p61 = scmp.eq.s32.totalorder %s20, 0
      %p62 = por %p60, %p61
      %p63 = scmp.ne.s32.totalorder %s51, %s52
      %p64 = scmp.eq.s32.totalorder %s21, 1
      %p65 = por %p63, %p64
      %p67 = scmp.ne.s32.totalorder %s52, %s66
      %p68 = scmp.eq.s32.totalorder %s21, 0
      %p69 = por %p67, %p68
      %s70 = ssub.s32 %s15, %s22
      %p71 = scmp.eq.s32.totalorder %s70, 0
      %s73 = sadd.s32 %s72, 1
      %s74 = scalar_select %p71, %s72, %s73
      %p77 = pneg %p71
      %p78 = scmp.eq.s32.totalorder %s15, 1
      %p79 = por %p77, %p78
      %p80 = scmp.ne.s32.totalorder %s72, %s75
      %p81 = scmp.eq.s32.totalorder %s15, 0
      %p82 = por %p80, %p81
      %p83 = scmp.ne.s32.totalorder %s72, %s75
      %p84 = scmp.eq.s32.totalorder %s20, 1
      %p85 = por %p83, %p84
      %p86 = scmp.ne.s32.totalorder %s75, %s76
      %p87 = scmp.eq.s32.totalorder %s20, 0
      %p88 = por %p86, %p87
      %p89 = scmp.ne.s32.totalorder %s75, %s76
      %p90 = scmp.eq.s32.totalorder %s21, 1
      %p91 = por %p89, %p90
      %p93 = scmp.ne.s32.totalorder %s76, %s92
      %p94 = scmp.eq.s32.totalorder %s21, 0
      %p95 = por %p93, %p94
      %p96 = scmp.le.s32.totalorder 1, %s15
      %p97 = scmp.lt.s32.totalorder %s15, 3
      %p98 = pnand %p96, %p97
      %p99 = pneg %p98
      // Predicated region
      $region9: #{_proj_matmul.1} parent=5 // pred_check
        _
      $region10: #{_proj_matmul.1} parent=5 // pred_check_branch
        %101 = sbr.rel (%p98) target = $region12
      $region11: #{_proj_matmul.1} parent=5 // pred_region
        %s102 = ssub.s32 %s15, 1
        // Predicated region
        $region13: #{_proj_matmul.1} parent=11 // pred_check
          %p103 = pneg %p62
        $region14: #{_proj_matmul.1} parent=11 // pred_check_branch
          %105 = sbr.rel (%p103) target = $region16
        $region15: #{_proj_matmul.1} parent=11 // pred_region
          %s107 = ssub.s32 16384, 16384
          %108 = vsyncadd [#allocation6], %s107
          %s109 = sshll.u32 [#allocation5], 4
          %s110 = int_to_ptr.vmem [resolvable:$true] %s109
          %115 = dma.hbm_to_vmem [thread:$0]  %s1, 16384, %s110, [#allocation6], 256, 256, 16
        $region16: #{_proj_matmul.1} parent=11 // pred_fallthru
          _
      $region12: #{_proj_matmul.1} parent=5 // pred_fallthru
        _
      %p116 = scmp.lt.s32.totalorder %s15, 2
      // Predicated region
      $region17: #{_proj_matmul.1} parent=5 // pred_check
        %p117 = pneg %p116
      $region18: #{_proj_matmul.1} parent=5 // pred_check_branch
        %119 = sbr.rel (%p117) target = $region20
      $region19: #{_proj_matmul.1} parent=5 // pred_region
        // Predicated region
        $region21: #{_proj_matmul.1} parent=19 // pred_check
          %p120 = pneg %p35
        $region22: #{_proj_matmul.1} parent=19 // pred_check_branch
          %122 = sbr.rel (%p120) target = $region24
        $region23: #{_proj_matmul.1} parent=19 // pred_region
          %s123 = sand.u32 %s25, 1
          %s124 = scalar_lea.sflag [#allocation3], %s123
          %s125 = sand.u32 %s25, 1
          %s126 = smul.addr %s125, 320
          %s127 = scalar_lea.vmem [#allocation2], %s126
          %s128 = smul.u32 10, %s15
          %s130 = ssub.s32 5120, 5120
          %131 = vsyncadd %s124, %s130
          %s132 = smul.addr %s128, 4
          %s133 = smul.addr %s132, 128
          %s134 = scalar_lea.hbm %s0, %s133
          %s135 = sshll.u32 %s127, 4
          %s136 = int_to_ptr.vmem [resolvable:$true] %s135
          %141 = dma.hbm_to_vmem [thread:$0]  %s134, 5120, %s136, %s124, 512, 512, 32
        $region24: #{_proj_matmul.1} parent=19 // pred_fallthru
          _
      $region20: #{_proj_matmul.1} parent=5 // pred_fallthru
        _
      %p142 = scmp.le.s32.totalorder 1, %s15
      %p143 = scmp.lt.s32.totalorder %s15, 3
      %p144 = pnand %p142, %p143
      %p145 = pneg %p144
      // Predicated region
      $region25: #{_proj_matmul.1} parent=5 // pred_check
        _
      $region26: #{_proj_matmul.1} parent=5 // pred_check_branch
        %147 = sbr.rel (%p144) target = $region28
      $region27: #{_proj_matmul.1} parent=5 // pred_region
        %s148 = ssub.s32 %s15, 1
        %s149 = sand.u32 %s28, 1
        %s150 = scalar_lea.sflag [#allocation3], %s149
        %s151 = sand.u32 %s28, 1
        %s152 = smul.addr %s151, 320
        %s153 = scalar_lea.vmem [#allocation2], %s152
        // Predicated region
        $region29: #{_proj_matmul.1} parent=27 // pred_check
          %p154 = pneg %p41
        $region30: #{_proj_matmul.1} parent=27 // pred_check_branch
          %156 = sbr.rel (%p154) target = $region32
        $region31: #{_proj_matmul.1} parent=27 // pred_region
          %157 = dma.done %s150, 5120
        $region32: #{_proj_matmul.1} parent=27 // pred_fallthru
          _
        // Predicated region
        $region33: #{_proj_matmul.1} parent=27 // pred_check
          %p158 = pneg %p62
        $region34: #{_proj_matmul.1} parent=27 // pred_check_branch
          %160 = sbr.rel (%p158) target = $region36
        $region35: #{_proj_matmul.1} parent=27 // pred_region
          %161 = dma.done [#allocation6], 16384
        $region36: #{_proj_matmul.1} parent=27 // pred_fallthru
          _
        %s162 = sand.u32 %s28, 1
        %s163 = scalar_lea.sflag [#allocation3], %s162
        %s164 = sand.u32 %s28, 1
        %s165 = smul.addr %s164, 320
        %s166 = scalar_lea.vmem [#allocation2], %s165
        %p167 = pneg %p41
        %p168 = pneg %p38
        %p169 = pneg %p62
        %p170 = pneg %p59
        %p171 = pneg %p88
        %p172 = pneg %p85
        %s173 = sand.u32 %s75, 1
        %s174 = scalar_lea.sflag [#allocation4], %s173
        %s175 = sand.u32 %s75, 1
        %s176 = smul.addr %s175, 160
        %s177 = scalar_lea.vmem [#allocation7], %s176
        %s178 = smul.u32 10, %s20
        %s179 = smul.u32 10, %s20
        %v180 = vld [vmem:[%s153] sm:$0xff]
        %v181 = vld [vmem:[%s153 + $0x8] sm:$0xff]
        %v182 = vld [vmem:[%s153 + $0x10] sm:$0xff]
        %v183 = vld [vmem:[%s153 + $0x18] sm:$0xff]
        %v184 = vld [vmem:[%s153 + $0x20] sm:$0xff]
        %v185 = vld [vmem:[%s153 + $0x28] sm:$0xff]
        %v186 = vld [vmem:[%s153 + $0x30] sm:$0xff]
        %v187 = vld [vmem:[%s153 + $0x38] sm:$0xff]
        %v188 = vld [vmem:[%s153 + $0x40] sm:$0xff]
        %v189 = vld [vmem:[%s153 + $0x48] sm:$0xff]
        %v190 = vld [vmem:[%s153 + $0x50] sm:$0xff]
        %v191 = vld [vmem:[%s153 + $0x58] sm:$0xff]
        %v192 = vld [vmem:[%s153 + $0x60] sm:$0xff]
        %v193 = vld [vmem:[%s153 + $0x68] sm:$0xff]
        %v194 = vld [vmem:[%s153 + $0x70] sm:$0xff]
        %v195 = vld [vmem:[%s153 + $0x78] sm:$0xff]
        %v196 = vld [vmem:[%s153 + $0x80] sm:$0xff]
        %v197 = vld [vmem:[%s153 + $0x88] sm:$0xff]
        %v198 = vld [vmem:[%s153 + $0x90] sm:$0xff]
        %v199 = vld [vmem:[%s153 + $0x98] sm:$0xff]
        %v200 = vld [vmem:[%s153 + $0xa0] sm:$0xff]
        %v201 = vld [vmem:[%s153 + $0xa8] sm:$0xff]
        %v202 = vld [vmem:[%s153 + $0xb0] sm:$0xff]
        %v203 = vld [vmem:[%s153 + $0xb8] sm:$0xff]
        %v204 = vld [vmem:[%s153 + $0xc0] sm:$0xff]
        %v205 = vld [vmem:[%s153 + $0xc8] sm:$0xff]
        %v206 = vld [vmem:[%s153 + $0xd0] sm:$0xff]
        %v207 = vld [vmem:[%s153 + $0xd8] sm:$0xff]
        %v208 = vld [vmem:[%s153 + $0xe0] sm:$0xff]
        %v209 = vld [vmem:[%s153 + $0xe8] sm:$0xff]
        %v210 = vld [vmem:[%s153 + $0xf0] sm:$0xff]
        %v211 = vld [vmem:[%s153 + $0xf8] sm:$0xff]
        %v212 = vld [vmem:[%s153 + $0x100] sm:$0xff]
        %v213 = vld [vmem:[%s153 + $0x108] sm:$0xff]
        %v214 = vld [vmem:[%s153 + $0x110] sm:$0xff]
        %v215 = vld [vmem:[%s153 + $0x118] sm:$0xff]
        %v216 = vld [vmem:[%s153 + $0x120] sm:$0xff]
        %v217 = vld [vmem:[%s153 + $0x128] sm:$0xff]
        %v218 = vld [vmem:[%s153 + $0x130] sm:$0xff]
        %v219 = vld [vmem:[%s153 + $0x138] sm:$0xff]
        %v220 = vld [vmem:[#allocation5] sm:$0xff]
        %v221 = vld [vmem:[#allocation5 + $0x8] sm:$0xff]
        %v222 = vld [vmem:[#allocation5 + $0x10] sm:$0xff]
        %v223 = vld [vmem:[#allocation5 + $0x18] sm:$0xff]
        %v224 = vld [vmem:[#allocation5 + $0x20] sm:$0xff]
        %v225 = vld [vmem:[#allocation5 + $0x28] sm:$0xff]
        %v226 = vld [vmem:[#allocation5 + $0x30] sm:$0xff]
        %v227 = vld [vmem:[#allocation5 + $0x38] sm:$0xff]
        %v228 = vld [vmem:[#allocation5 + $0x40] sm:$0xff]
        %v229 = vld [vmem:[#allocation5 + $0x48] sm:$0xff]
        %v230 = vld [vmem:[#allocation5 + $0x50] sm:$0xff]
        %v231 = vld [vmem:[#allocation5 + $0x58] sm:$0xff]
        %v232 = vld [vmem:[#allocation5 + $0x60] sm:$0xff]
        %v233 = vld [vmem:[#allocation5 + $0x68] sm:$0xff]
        %v234 = vld [vmem:[#allocation5 + $0x70] sm:$0xff]
        %v235 = vld [vmem:[#allocation5 + $0x78] sm:$0xff]
        %v236 = vld [vmem:[#allocation5 + $0x80] sm:$0xff]
        %v237 = vld [vmem:[#allocation5 + $0x88] sm:$0xff]
        %v238 = vld [vmem:[#allocation5 + $0x90] sm:$0xff]
        %v239 = vld [vmem:[#allocation5 + $0x98] sm:$0xff]
        %v240 = vld [vmem:[#allocation5 + $0xa0] sm:$0xff]
        %v241 = vld [vmem:[#allocation5 + $0xa8] sm:$0xff]
        %v242 = vld [vmem:[#allocation5 + $0xb0] sm:$0xff]
        %v243 = vld [vmem:[#allocation5 + $0xb8] sm:$0xff]
        %v244 = vld [vmem:[#allocation5 + $0xc0] sm:$0xff]
        %v245 = vld [vmem:[#allocation5 + $0xc8] sm:$0xff]
        %v246 = vld [vmem:[#allocation5 + $0xd0] sm:$0xff]
        %v247 = vld [vmem:[#allocation5 + $0xd8] sm:$0xff]
        %v248 = vld [vmem:[#allocation5 + $0xe0] sm:$0xff]
        %v249 = vld [vmem:[#allocation5 + $0xe8] sm:$0xff]
        %v250 = vld [vmem:[#allocation5 + $0xf0] sm:$0xff]
        %v251 = vld [vmem:[#allocation5 + $0xf8] sm:$0xff]
        %v252 = vld [vmem:[#allocation5 + $0x100] sm:$0xff]
        %v253 = vld [vmem:[#allocation5 + $0x108] sm:$0xff]
        %v254 = vld [vmem:[#allocation5 + $0x110] sm:$0xff]
        %v255 = vld [vmem:[#allocation5 + $0x118] sm:$0xff]
        %v256 = vld [vmem:[#allocation5 + $0x120] sm:$0xff]
        %v257 = vld [vmem:[#allocation5 + $0x128] sm:$0xff]
        %v258 = vld [vmem:[#allocation5 + $0x130] sm:$0xff]
        %v259 = vld [vmem:[#allocation5 + $0x138] sm:$0xff]
        %v260 = vld [vmem:[#allocation5 + $0x140] sm:$0xff]
        %v261 = vld [vmem:[#allocation5 + $0x148] sm:$0xff]
        %v262 = vld [vmem:[#allocation5 + $0x150] sm:$0xff]
        %v263 = vld [vmem:[#allocation5 + $0x158] sm:$0xff]
        %v264 = vld [vmem:[#allocation5 + $0x160] sm:$0xff]
        %v265 = vld [vmem:[#allocation5 + $0x168] sm:$0xff]
        %v266 = vld [vmem:[#allocation5 + $0x170] sm:$0xff]
        %v267 = vld [vmem:[#allocation5 + $0x178] sm:$0xff]
        %v268 = vld [vmem:[#allocation5 + $0x180] sm:$0xff]
        %v269 = vld [vmem:[#allocation5 + $0x188] sm:$0xff]
        %v270 = vld [vmem:[#allocation5 + $0x190] sm:$0xff]
        %v271 = vld [vmem:[#allocation5 + $0x198] sm:$0xff]
        %v272 = vld [vmem:[#allocation5 + $0x1a0] sm:$0xff]
        %v273 = vld [vmem:[#allocation5 + $0x1a8] sm:$0xff]
        %v274 = vld [vmem:[#allocation5 + $0x1b0] sm:$0xff]
        %v275 = vld [vmem:[#allocation5 + $0x1b8] sm:$0xff]
        %v276 = vld [vmem:[#allocation5 + $0x1c0] sm:$0xff]
        %v277 = vld [vmem:[#allocation5 + $0x1c8] sm:$0xff]
        %v278 = vld [vmem:[#allocation5 + $0x1d0] sm:$0xff]
        %v279 = vld [vmem:[#allocation5 + $0x1d8] sm:$0xff]
        %v280 = vld [vmem:[#allocation5 + $0x1e0] sm:$0xff]
        %v281 = vld [vmem:[#allocation5 + $0x1e8] sm:$0xff]
        %v282 = vld [vmem:[#allocation5 + $0x1f0] sm:$0xff]
        %v283 = vld [vmem:[#allocation5 + $0x1f8] sm:$0xff]
        %v284 = vld [vmem:[#allocation5 + $0x200] sm:$0xff]
        %v285 = vld [vmem:[#allocation5 + $0x208] sm:$0xff]
        %v286 = vld [vmem:[#allocation5 + $0x210] sm:$0xff]
        %v287 = vld [vmem:[#allocation5 + $0x218] sm:$0xff]
        %v288 = vld [vmem:[#allocation5 + $0x220] sm:$0xff]
        %v289 = vld [vmem:[#allocation5 + $0x228] sm:$0xff]
        %v290 = vld [vmem:[#allocation5 + $0x230] sm:$0xff]
        %v291 = vld [vmem:[#allocation5 + $0x238] sm:$0xff]
        %v292 = vld [vmem:[#allocation5 + $0x240] sm:$0xff]
        %v293 = vld [vmem:[#allocation5 + $0x248] sm:$0xff]
        %v294 = vld [vmem:[#allocation5 + $0x250] sm:$0xff]
        %v295 = vld [vmem:[#allocation5 + $0x258] sm:$0xff]
        %v296 = vld [vmem:[#allocation5 + $0x260] sm:$0xff]
        %v297 = vld [vmem:[#allocation5 + $0x268] sm:$0xff]
        %v298 = vld [vmem:[#allocation5 + $0x270] sm:$0xff]
        %v299 = vld [vmem:[#allocation5 + $0x278] sm:$0xff]
        %v300 = vld [vmem:[#allocation5 + $0x280] sm:$0xff]
        %v301 = vld [vmem:[#allocation5 + $0x288] sm:$0xff]
        %v302 = vld [vmem:[#allocation5 + $0x290] sm:$0xff]
        %v303 = vld [vmem:[#allocation5 + $0x298] sm:$0xff]
        %v304 = vld [vmem:[#allocation5 + $0x2a0] sm:$0xff]
        %v305 = vld [vmem:[#allocation5 + $0x2a8] sm:$0xff]
        %v306 = vld [vmem:[#allocation5 + $0x2b0] sm:$0xff]
        %v307 = vld [vmem:[#allocation5 + $0x2b8] sm:$0xff]
        %v308 = vld [vmem:[#allocation5 + $0x2c0] sm:$0xff]
        %v309 = vld [vmem:[#allocation5 + $0x2c8] sm:$0xff]
        %v310 = vld [vmem:[#allocation5 + $0x2d0] sm:$0xff]
        %v311 = vld [vmem:[#allocation5 + $0x2d8] sm:$0xff]
        %v312 = vld [vmem:[#allocation5 + $0x2e0] sm:$0xff]
        %v313 = vld [vmem:[#allocation5 + $0x2e8] sm:$0xff]
        %v314 = vld [vmem:[#allocation5 + $0x2f0] sm:$0xff]
        %v315 = vld [vmem:[#allocation5 + $0x2f8] sm:$0xff]
        %v316 = vld [vmem:[#allocation5 + $0x300] sm:$0xff]
        %v317 = vld [vmem:[#allocation5 + $0x308] sm:$0xff]
        %v318 = vld [vmem:[#allocation5 + $0x310] sm:$0xff]
        %v319 = vld [vmem:[#allocation5 + $0x318] sm:$0xff]
        %v320 = vld [vmem:[#allocation5 + $0x320] sm:$0xff]
        %v321 = vld [vmem:[#allocation5 + $0x328] sm:$0xff]
        %v322 = vld [vmem:[#allocation5 + $0x330] sm:$0xff]
        %v323 = vld [vmem:[#allocation5 + $0x338] sm:$0xff]
        %v324 = vld [vmem:[#allocation5 + $0x340] sm:$0xff]
        %v325 = vld [vmem:[#allocation5 + $0x348] sm:$0xff]
        %v326 = vld [vmem:[#allocation5 + $0x350] sm:$0xff]
        %v327 = vld [vmem:[#allocation5 + $0x358] sm:$0xff]
        %v328 = vld [vmem:[#allocation5 + $0x360] sm:$0xff]
        %v329 = vld [vmem:[#allocation5 + $0x368] sm:$0xff]
        %v330 = vld [vmem:[#allocation5 + $0x370] sm:$0xff]
        %v331 = vld [vmem:[#allocation5 + $0x378] sm:$0xff]
        %v332 = vld [vmem:[#allocation5 + $0x380] sm:$0xff]
        %v333 = vld [vmem:[#allocation5 + $0x388] sm:$0xff]
        %v334 = vld [vmem:[#allocation5 + $0x390] sm:$0xff]
        %v335 = vld [vmem:[#allocation5 + $0x398] sm:$0xff]
        %v336 = vld [vmem:[#allocation5 + $0x3a0] sm:$0xff]
        %v337 = vld [vmem:[#allocation5 + $0x3a8] sm:$0xff]
        %v338 = vld [vmem:[#allocation5 + $0x3b0] sm:$0xff]
        %v339 = vld [vmem:[#allocation5 + $0x3b8] sm:$0xff]
        %v340 = vld [vmem:[#allocation5 + $0x3c0] sm:$0xff]
        %v341 = vld [vmem:[#allocation5 + $0x3c8] sm:$0xff]
        %v342 = vld [vmem:[#allocation5 + $0x3d0] sm:$0xff]
        %v343 = vld [vmem:[#allocation5 + $0x3d8] sm:$0xff]
        %v344 = vld [vmem:[#allocation5 + $0x3e0] sm:$0xff]
        %v345 = vld [vmem:[#allocation5 + $0x3e8] sm:$0xff]
        %v346 = vld [vmem:[#allocation5 + $0x3f0] sm:$0xff]
        %v347 = vld [vmem:[#allocation5 + $0x3f8] sm:$0xff]
        %348 = vmatprep.subr.mxu0 %v221
        %349 = vmatpush1.msra.mxu0 %v220
        %350 = vmatprep.subr.mxu0 %v223
        %351 = vmatpush1.msra.mxu0 %v222
        %352 = vmatprep.subr.mxu0 %v225
        %353 = vmatpush1.msra.mxu0 %v224
        %354 = vmatprep.subr.mxu0 %v227
        %355 = vmatpush1.msra.mxu0 %v226
        %356 = vmatprep.subr.mxu0 %v229
        %357 = vmatpush1.msra.mxu0 %v228
        %358 = vmatprep.subr.mxu0 %v231
        %359 = vmatpush1.msra.mxu0 %v230
        %360 = vmatprep.subr.mxu0 %v233
        %361 = vmatpush1.msra.mxu0 %v232
        %362 = vmatprep.subr.mxu0 %v235
        %363 = vmatpush1.msra.mxu0 %v234
        %364 = vmatprep.subr.mxu0 %v237
        %365 = vmatpush1.msra.mxu0 %v236
        %366 = vmatprep.subr.mxu0 %v239
        %367 = vmatpush1.msra.mxu0 %v238
        %368 = vmatprep.subr.mxu0 %v241
        %369 = vmatpush1.msra.mxu0 %v240
        %370 = vmatprep.subr.mxu0 %v243
        %371 = vmatpush1.msra.mxu0 %v242
        %372 = vmatprep.subr.mxu0 %v245
        %373 = vmatpush1.msra.mxu0 %v244
        %374 = vmatprep.subr.mxu0 %v247
        %375 = vmatpush1.msra.mxu0 %v246
        %376 = vmatprep.subr.mxu0 %v249
        %377 = vmatpush1.msra.mxu0 %v248
        %378 = vmatprep.subr.mxu0 %v251
        %379 = vmatpush1.msra.mxu0 %v250
        %380 = vmatprep.subr.mxu0 %v253
        %381 = vmatpush1.msra.mxu0 %v252
        %382 = vmatprep.subr.mxu0 %v255
        %383 = vmatpush1.msra.mxu0 %v254
        %384 = vmatprep.subr.mxu0 %v257
        %385 = vmatpush1.msra.mxu0 %v256
        %386 = vmatprep.subr.mxu0 %v259
        %387 = vmatpush1.msra.mxu0 %v258
        %388 = vmatprep.subr.mxu0 %v261
        %389 = vmatpush1.msra.mxu0 %v260
        %390 = vmatprep.subr.mxu0 %v263
        %391 = vmatpush1.msra.mxu0 %v262
        %392 = vmatprep.subr.mxu0 %v265
        %393 = vmatpush1.msra.mxu0 %v264
        %394 = vmatprep.subr.mxu0 %v267
        %395 = vmatpush1.msra.mxu0 %v266
        %396 = vmatprep.subr.mxu0 %v269
        %397 = vmatpush1.msra.mxu0 %v268
        %398 = vmatprep.subr.mxu0 %v271
        %399 = vmatpush1.msra.mxu0 %v270
        %400 = vmatprep.subr.mxu0 %v273
        %401 = vmatpush1.msra.mxu0 %v272
        %402 = vmatprep.subr.mxu0 %v275
        %403 = vmatpush1.msra.mxu0 %v274
        %404 = vmatprep.subr.mxu0 %v277
        %405 = vmatpush1.msra.mxu0 %v276
        %406 = vmatprep.subr.mxu0 %v279
        %407 = vmatpush1.msra.mxu0 %v278
        %408 = vmatprep.subr.mxu0 %v281
        %409 = vmatpush1.msra.mxu0 %v280
        %410 = vmatprep.subr.mxu0 %v283
        %411 = vmatpush1.msra.mxu0 %v282
        %412 = vmatprep.mubr.f32.mxu0 %v181
        %413 = vmatmul.mubr.f32.gmra.mrb[0].mxu0 %v180
        %v414 = vpop.f32.mrb[0].mxu0
        %v415 = vadd.f32 0.0, %v414
        %v416 = vpop.f32.mrb[0].mxu0
        %v417 = vadd.f32 0.0, %v416
        %418 = vmatprep.mubr.f32.mxu0 %v185
        %419 = vmatmul.mubr.f32.gmra.mrb[0].mxu0 %v184
        %v420 = vpop.f32.mrb[0].mxu0
        %v421 = vadd.f32 0.0, %v420
        %v422 = vpop.f32.mrb[0].mxu0
        %v423 = vadd.f32 0.0, %v422
        %424 = vmatprep.mubr.f32.mxu0 %v189
        %425 = vmatmul.mubr.f32.gmra.mrb[0].mxu0 %v188
        %v426 = vpop.f32.mrb[0].mxu0
        %v427 = vadd.f32 0.0, %v426
        %v428 = vpop.f32.mrb[0].mxu0
        %v429 = vadd.f32 0.0, %v428
        %430 = vmatprep.mubr.f32.mxu0 %v193
        %431 = vmatmul.mubr.f32.gmra.mrb[0].mxu0 %v192
        %v432 = vpop.f32.mrb[0].mxu0
        %v433 = vadd.f32 0.0, %v432
        %v434 = vpop.f32.mrb[0].mxu0
        %v435 = vadd.f32 0.0, %v434
        %436 = vmatprep.mubr.f32.mxu0 %v197
        %437 = vmatmul.mubr.f32.gmra.mrb[0].mxu0 %v196
        %v438 = vpop.f32.mrb[0].mxu0
        %v439 = vadd.f32 0.0, %v438
        %v440 = vpop.f32.mrb[0].mxu0
        %v441 = vadd.f32 0.0, %v440
        %442 = vmatprep.mubr.f32.mxu0 %v201
        %443 = vmatmul.mubr.f32.gmra.mrb[0].mxu0 %v200
        %v444 = vpop.f32.mrb[0].mxu0
        %v445 = vadd.f32 0.0, %v444
        %v446 = vpop.f32.mrb[0].mxu0
        %v447 = vadd.f32 0.0, %v446
        %448 = vmatprep.mubr.f32.mxu0 %v205
        %449 = vmatmul.mubr.f32.gmra.mrb[0].mxu0 %v204
        %v450 = vpop.f32.mrb[0].mxu0
        %v451 = vadd.f32 0.0, %v450
        %v452 = vpop.f32.mrb[0].mxu0
        %v453 = vadd.f32 0.0, %v452
        %454 = vmatprep.mubr.f32.mxu0 %v209
        %455 = vmatmul.mubr.f32.gmra.mrb[0].mxu0 %v208
        %v456 = vpop.f32.mrb[0].mxu0
        %v457 = vadd.f32 0.0, %v456
        %v458 = vpop.f32.mrb[0].mxu0
        %v459 = vadd.f32 0.0, %v458
        %460 = vmatprep.mubr.f32.mxu0 %v213
        %461 = vmatmul.mubr.f32.gmra.mrb[0].mxu0 %v212
        %v462 = vpop.f32.mrb[0].mxu0
        %v463 = vadd.f32 0.0, %v462
        %v464 = vpop.f32.mrb[0].mxu0
        %v465 = vadd.f32 0.0, %v464
        %466 = vmatprep.mubr.f32.mxu0 %v217
        %467 = vmatmul.mubr.f32.gmra.mrb[0].mxu0 %v216
        %v468 = vpop.f32.mrb[0].mxu0
        %v469 = vadd.f32 0.0, %v468
        %v470 = vpop.f32.mrb[0].mxu0
        %v471 = vadd.f32 0.0, %v470
        %472 = vdwg.mxu0
        %473 = vmatprep.subr.mxu0 %v285
        %474 = vmatpush1.msra.mxu0 %v284
        %475 = vmatprep.subr.mxu0 %v287
        %476 = vmatpush1.msra.mxu0 %v286
        %477 = vmatprep.subr.mxu0 %v289
        %478 = vmatpush1.msra.mxu0 %v288
        %479 = vmatprep.subr.mxu0 %v291
        %480 = vmatpush1.msra.mxu0 %v290
        %481 = vmatprep.subr.mxu0 %v293
        %482 = vmatpush1.msra.mxu0 %v292
        %483 = vmatprep.subr.mxu0 %v295
        %484 = vmatpush1.msra.mxu0 %v294
        %485 = vmatprep.subr.mxu0 %v297
        %486 = vmatpush1.msra.mxu0 %v296
        %487 = vmatprep.subr.mxu0 %v299
        %488 = vmatpush1.msra.mxu0 %v298
        %489 = vmatprep.subr.mxu0 %v301
        %490 = vmatpush1.msra.mxu0 %v300
        %491 = vmatprep.subr.mxu0 %v303
        %492 = vmatpush1.msra.mxu0 %v302
        %493 = vmatprep.subr.mxu0 %v305
        %494 = vmatpush1.msra.mxu0 %v304
        %495 = vmatprep.subr.mxu0 %v307
        %496 = vmatpush1.msra.mxu0 %v306
        %497 = vmatprep.subr.mxu0 %v309
        %498 = vmatpush1.msra.mxu0 %v308
        %499 = vmatprep.subr.mxu0 %v311
        %500 = vmatpush1.msra.mxu0 %v310
        %501 = vmatprep.subr.mxu0 %v313
        %502 = vmatpush1.msra.mxu0 %v312
        %503 = vmatprep.subr.mxu0 %v315
        %504 = vmatpush1.msra.mxu0 %v314
        %505 = vmatprep.subr.mxu0 %v317
        %506 = vmatpush1.msra.mxu0 %v316
        %507 = vmatprep.subr.mxu0 %v319
        %508 = vmatpush1.msra.mxu0 %v318
        %509 = vmatprep.subr.mxu0 %v321
        %510 = vmatpush1.msra.mxu0 %v320
        %511 = vmatprep.subr.mxu0 %v323
        %512 = vmatpush1.msra.mxu0 %v322
        %513 = vmatprep.subr.mxu0 %v325
        %514 = vmatpush1.msra.mxu0 %v324
        %515 = vmatprep.subr.mxu0 %v327
        %516 = vmatpush1.msra.mxu0 %v326
        %517 = vmatprep.subr.mxu0 %v329
        %518 = vmatpush1.msra.mxu0 %v328
        %519 = vmatprep.subr.mxu0 %v331
        %520 = vmatpush1.msra.mxu0 %v330
        %521 = vmatprep.subr.mxu0 %v333
        %522 = vmatpush1.msra.mxu0 %v332
        %523 = vmatprep.subr.mxu0 %v335
        %524 = vmatpush1.msra.mxu0 %v334
        %525 = vmatprep.subr.mxu0 %v337
        %526 = vmatpush1.msra.mxu0 %v336
        %527 = vmatprep.subr.mxu0 %v339
        %528 = vmatpush1.msra.mxu0 %v338
        %529 = vmatprep.subr.mxu0 %v341
        %530 = vmatpush1.msra.mxu0 %v340
        %531 = vmatprep.subr.mxu0 %v343
        %532 = vmatpush1.msra.mxu0 %v342
        %533 = vmatprep.subr.mxu0 %v345
        %534 = vmatpush1.msra.mxu0 %v344
        %535 = vmatprep.subr.mxu0 %v347
        %536 = vmatpush1.msra.mxu0 %v346
        %537 = vmatprep.mubr.f32.mxu0 %v183
        %538 = vmatmul.mubr.f32.gmra.mrb[0].mxu0 %v182
        %v539 = vpop.f32.mrb[0].mxu0
        %v540 = vadd.f32 %v415, %v539
        %v541 = vpop.f32.mrb[0].mxu0
        %v542 = vadd.f32 %v417, %v541
        %543 = vmatprep.mubr.f32.mxu0 %v187
        %544 = vmatmul.mubr.f32.gmra.mrb[0].mxu0 %v186
        %v545 = vpop.f32.mrb[0].mxu0
        %v546 = vadd.f32 %v421, %v545
        %v547 = vpop.f32.mrb[0].mxu0
        %v548 = vadd.f32 %v423, %v547
        %549 = vmatprep.mubr.f32.mxu0 %v191
        %550 = vmatmul.mubr.f32.gmra.mrb[0].mxu0 %v190
        %v551 = vpop.f32.mrb[0].mxu0
        %v552 = vadd.f32 %v427, %v551
        %v553 = vpop.f32.mrb[0].mxu0
        %v554 = vadd.f32 %v429, %v553
        %555 = vmatprep.mubr.f32.mxu0 %v195
        %556 = vmatmul.mubr.f32.gmra.mrb[0].mxu0 %v194
        %v557 = vpop.f32.mrb[0].mxu0
        %v558 = vadd.f32 %v433, %v557
        %v559 = vpop.f32.mrb[0].mxu0
        %v560 = vadd.f32 %v435, %v559
        %561 = vmatprep.mubr.f32.mxu0 %v199
        %562 = vmatmul.mubr.f32.gmra.mrb[0].mxu0 %v198
        %v563 = vpop.f32.mrb[0].mxu0
        %v564 = vadd.f32 %v439, %v563
        %v565 = vpop.f32.mrb[0].mxu0
        %v566 = vadd.f32 %v441, %v565
        %567 = vmatprep.mubr.f32.mxu0 %v203
        %568 = vmatmul.mubr.f32.gmra.mrb[0].mxu0 %v202
        %v569 = vpop.f32.mrb[0].mxu0
        %v570 = vadd.f32 %v445, %v569
        %v571 = vpop.f32.mrb[0].mxu0
        %v572 = vadd.f32 %v447, %v571
        %573 = vmatprep.mubr.f32.mxu0 %v207
        %574 = vmatmul.mubr.f32.gmra.mrb[0].mxu0 %v206
        %v575 = vpop.f32.mrb[0].mxu0
        %v576 = vadd.f32 %v451, %v575
        %v577 = vpop.f32.mrb[0].mxu0
        %v578 = vadd.f32 %v453, %v577
        %579 = vmatprep.mubr.f32.mxu0 %v211
        %580 = vmatmul.mubr.f32.gmra.mrb[0].mxu0 %v210
        %v581 = vpop.f32.mrb[0].mxu0
        %v582 = vadd.f32 %v457, %v581
        %v583 = vpop.f32.mrb[0].mxu0
        %v584 = vadd.f32 %v459, %v583
        %585 = vmatprep.mubr.f32.mxu0 %v215
        %586 = vmatmul.mubr.f32.gmra.mrb[0].mxu0 %v214
        %v587 = vpop.f32.mrb[0].mxu0
        %v588 = vadd.f32 %v463, %v587
        %v589 = vpop.f32.mrb[0].mxu0
        %v590 = vadd.f32 %v465, %v589
        %591 = vmatprep.mubr.f32.mxu0 %v219
        %592 = vmatmul.mubr.f32.gmra.mrb[0].mxu0 %v218
        %v593 = vpop.f32.mrb[0].mxu0
        %v594 = vadd.f32 %v469, %v593
        %v595 = vpop.f32.mrb[0].mxu0
        %v596 = vadd.f32 %v471, %v595
        %597 = vdwg.mxu0
        %598 = vst [vmem:[%s177] sm:$0xff] %v540
        %599 = vst [vmem:[%s177 + $0x8] sm:$0xff] %v542
        %600 = vst [vmem:[%s177 + $0x10] sm:$0xff] %v546
        %601 = vst [vmem:[%s177 + $0x18] sm:$0xff] %v548
        %602 = vst [vmem:[%s177 + $0x20] sm:$0xff] %v552
        %603 = vst [vmem:[%s177 + $0x28] sm:$0xff] %v554
        %604 = vst [vmem:[%s177 + $0x30] sm:$0xff] %v558
        %605 = vst [vmem:[%s177 + $0x38] sm:$0xff] %v560
        %606 = vst [vmem:[%s177 + $0x40] sm:$0xff] %v564
        %607 = vst [vmem:[%s177 + $0x48] sm:$0xff] %v566
        %608 = vst [vmem:[%s177 + $0x50] sm:$0xff] %v570
        %609 = vst [vmem:[%s177 + $0x58] sm:$0xff] %v572
        %610 = vst [vmem:[%s177 + $0x60] sm:$0xff] %v576
        %611 = vst [vmem:[%s177 + $0x68] sm:$0xff] %v578
        %612 = vst [vmem:[%s177 + $0x70] sm:$0xff] %v582
        %613 = vst [vmem:[%s177 + $0x78] sm:$0xff] %v584
        %614 = vst [vmem:[%s177 + $0x80] sm:$0xff] %v588
        %615 = vst [vmem:[%s177 + $0x88] sm:$0xff] %v590
        %616 = vst [vmem:[%s177 + $0x90] sm:$0xff] %v594
        %617 = vst [vmem:[%s177 + $0x98] sm:$0xff] %v596
        %s618 = sand.u32 %s75, 1
        %s619 = scalar_lea.sflag [#allocation4], %s618
        %s620 = sand.u32 %s75, 1
        %s621 = smul.addr %s620, 160
        %s622 = scalar_lea.vmem [#allocation7], %s621
        // Predicated region
        $region37: #{_proj_matmul.1} parent=27 // pred_check
          %p623 = pneg %p85
        $region38: #{_proj_matmul.1} parent=27 // pred_check_branch
          %625 = sbr.rel (%p623) target = $region40
        $region39: #{_proj_matmul.1} parent=27 // pred_region
          %s626 = smul.u32 10, %s20
          %s628 = ssub.s32 2560, 2560
          %629 = vsyncadd %s619, %s628
          %s630 = smul.addr %s626, 2
          %s631 = smul.addr %s630, 128
          %s632 = scalar_lea.hbm %s2, %s631
          %s633 = sshll.u32 %s622, 4
          %s634 = int_to_ptr.vmem [resolvable:$true] %s633
          %639 = dma.vmem_to_hbm [thread:$0]  %s634, 2560, %s632, %s619, 256, 256, 16
        $region40: #{_proj_matmul.1} parent=27 // pred_fallthru
          _
      $region28: #{_proj_matmul.1} parent=5 // pred_fallthru
        _
      %p640 = scmp.le.s32.totalorder 2, %s15
      // Predicated region
      $region41: #{_proj_matmul.1} parent=5 // pred_check
        %p641 = pneg %p640
      $region42: #{_proj_matmul.1} parent=5 // pred_check_branch
        %643 = sbr.rel (%p641) target = $region44
      $region43: #{_proj_matmul.1} parent=5 // pred_region
        %s644 = ssub.s32 %s15, 2
        // Predicated region
        $region45: #{_proj_matmul.1} parent=43 // pred_check
          %p645 = pneg %p91
        $region46: #{_proj_matmul.1} parent=43 // pred_check_branch
          %647 = sbr.rel (%p645) target = $region48
        $region47: #{_proj_matmul.1} parent=43 // pred_region
          %s648 = sand.u32 %s76, 1
          %s649 = scalar_lea.sflag [#allocation4], %s648
          %s650 = sand.u32 %s76, 1
          %s651 = smul.addr %s650, 160
          %s652 = scalar_lea.vmem [#allocation7], %s651
          %653 = dma.done %s649, 2560
        $region48: #{_proj_matmul.1} parent=43 // pred_fallthru
          _
      $region44: #{_proj_matmul.1} parent=5 // pred_fallthru
        _
    $region6: #{_proj_matmul.1} parent=1 // loop_footer
      %s19 = sadd.s32 1, %s15
    $region7: #{_proj_matmul.1} parent=1 // loop_footer_branch
      %14 = sbr.rel target = $region3
    $region8: #{_proj_matmul.1} parent=1 // loop_exit
      _
    %654 = vsyncpa [#allocation3], 1
    %s655 = scalar_lea.sflag [#allocation3], 1
    %656 = vsyncpa %s655, 1
    %657 = vsyncpa [#allocation6], 1
    %658 = vsyncpa [#allocation4], 1
    %s659 = scalar_lea.sflag [#allocation4], 1
    %660 = vsyncpa %s659, 1

</llo_original>
